<compile_context>
chip_gen: v6e
topology: v6e:2x2x1
jax: 0.10.0
libtpu: 0.0.40
codegen_flags: <defaults>
</compile_context>

<pallas_src>
import functools

import jax
import jax.numpy as jnp
from jax import lax
from jax.experimental import pallas as pl
from jax.experimental.pallas import tpu as pltpu

EPS = 1e-5
NEG_SLOPE = 0.2


def _vmem_limit_bytes():
    """Scoped-VMEM limit sized per TPU generation (leave ~25% headroom)."""
    cap = 64 * 1024 * 1024
    try:
        cap = int(getattr(pltpu.get_tpu_info(), "vmem_capacity_bytes", cap))
    except Exception:
        pass
    return max(32 * 1024 * 1024, min(cap * 3 // 4, 96 * 1024 * 1024))


def _tile_footprint(th, wout, c8, cout, in_bytes, y_bytes):
    """Per-grid-step VMEM bytes for one TH-row tile (excl. resident weights)."""
    tp = th * wout
    return (2 * th * (wout + 1) * c8 * in_bytes   # double-buffered input tile
            + tp * (2 * c8) * in_bytes            # materialized dw=0/1 slice temps
            + 2 * tp * cout * 4                   # f32 matmul result + elementwise temps
            + 2 * tp * cout * y_bytes)            # double-buffered per-step output tile


def _pick_row_tile(hout, wout, c8, cout, in_bytes, y_bytes, budget):
    """Largest divisor of Hout whose per-step footprint fits `budget` (sublane-legal)."""
    best = None
    for th in range(1, hout + 1):
        if hout % th:
            continue
        if (th * wout) % 8 and th != hout:   # keep flattened spatial tile sublane-aligned
            continue
        if _tile_footprint(th, wout, c8, cout, in_bytes, y_bytes) <= budget:
            best = th
    if best is None:                          # nothing fits budget: smallest legal tile
        best = 1 if wout % 8 == 0 else hout
    return best


def _conv_tile(x_ref, w_ref, b_ref, th, wout):
    """One row tile of the stride-2 4x4 conv as two MXU matmuls (dw = 0, 1).

    x_ref: (TH, Wout+1, C8) with C8 = 8*Cin  -- dh tap folded into channels.
    w_ref: (2, C8, Cout)                     -- dw tap on the leading axis.
    Returns (TH*Wout, Cout) float32 pre-activation (bias added).
    """
    x = x_ref[...]
    c8 = x.shape[-1]
    tp = th * wout
    x0 = x[:, 0:wout, :].reshape(tp, c8)
    x1 = x[:, 1:wout + 1, :].reshape(tp, c8)
    # TODO(synk): for small Cin a VMEM im2col (concat x0,x1 -> one K=2*C8 dot)
    # would shave the remaining add + MXU push.
    y = jnp.dot(x0, w_ref[0], preferred_element_type=jnp.float32)
    y = y + jnp.dot(x1, w_ref[1], preferred_element_type=jnp.float32)
    return y + b_ref[...]


def _conv_act_kernel(x_ref, w_ref, b_ref, o_ref, *, th, wout):
    """apply_norm=False: conv + bias + LeakyReLU fused, tiled output."""
    y = _conv_tile(x_ref, w_ref, b_ref, th, wout)
    o_ref[...] = jnp.where(y >= 0.0, y, NEG_SLOPE * y).astype(o_ref.dtype)


def _fused_norm_kernel(x_ref, w_ref, b_ref, o_ref, sum_ref, ssq_ref,
                       *, th, wout, inv_p):
    """Fused conv + InstanceNorm + LeakyReLU; whole image resident in VMEM."""
    t = pl.program_id(1)
    nt = pl.num_programs(1)
    tp = th * wout

    def row0(i):
        return pl.multiple_of(i * tp, 8) if tp % 8 == 0 else i * tp

    y = _conv_tile(x_ref, w_ref, b_ref, th, wout)          # (TP, Cout) f32

    @pl.when(t == 0)
    def _():
        sum_ref[...] = jnp.zeros_like(sum_ref)
        ssq_ref[...] = jnp.zeros_like(ssq_ref)

    sum_ref[...] += jnp.sum(y, axis=0, keepdims=True)
    ssq_ref[...] += jnp.sum(y * y, axis=0, keepdims=True)
    o_ref[pl.ds(row0(t), tp), :] = y.astype(o_ref.dtype)    # stash pre-activation

    @pl.when(t == nt - 1)
    def _():
        mean = sum_ref[...] * inv_p                          # (1, Cout)
        var = jnp.maximum(ssq_ref[...] * inv_p - mean * mean, 0.0)
        rstd = lax.rsqrt(var + EPS)
        scale = rstd
        shift = -mean * rstd

        def body(i, carry):
            r = row0(i)
            blk = o_ref[pl.ds(r, tp), :].astype(jnp.float32) * scale + shift
            o_ref[pl.ds(r, tp), :] = jnp.where(
                blk >= 0.0, blk, NEG_SLOPE * blk).astype(o_ref.dtype)
            return carry

        lax.fori_loop(0, nt, body, 0)


def _conv_stats_kernel(x_ref, w_ref, b_ref, y_ref, stats_ref, *, th, wout):
    """Two-pass fallback, pass 1: conv + per-tile per-channel sum / sumsq."""
    y = _conv_tile(x_ref, w_ref, b_ref, th, wout)
    y_ref[...] = y.astype(y_ref.dtype)
    stats_ref[...] = jnp.concatenate(
        [jnp.sum(y, axis=0, keepdims=True),
         jnp.sum(y * y, axis=0, keepdims=True)], axis=0)


def _scale_shift_act_kernel(y_ref, ss_ref, o_ref):
    """Two-pass fallback, pass 2: y*scale + shift then LeakyReLU (one FMA)."""
    yn = y_ref[...].astype(jnp.float32) * ss_ref[0:1, :] + ss_ref[1:2, :]
    o_ref[...] = jnp.where(yn >= 0.0, yn, NEG_SLOPE * yn).astype(o_ref.dtype)


def block_forward(x, weight, bias, *, stride=2, apply_norm=True,
                  compute_dtype=jnp.bfloat16, force_two_pass=False):
    """x: (N, Cin, H, W) NCHW; weight: (Cout, Cin, 4, 4); bias: (Cout,)."""
    if stride != 2:
        # TODO(synk): only the stride-2 geometry of the discriminator Block is lowered.
        raise NotImplementedError("block_forward only supports stride=2")
    N, Cin, H, W = x.shape
    Cout = weight.shape[0]
    assert H % 2 == 0 and W % 2 == 0, "H and W must be even for k=4/s=2/p=1"
    Hout, Wout = H // 2, W // 2
    H2, W2 = Hout + 1, Wout + 1
    C4 = 4 * Cin            # space-to-depth channels
    C8 = 2 * C4             # dh tap folded into channels
    P = Hout * Wout
    out_dtype = x.dtype
    in_bytes = jnp.dtype(compute_dtype).itemsize
    out_bytes = jnp.dtype(out_dtype).itemsize

    # ---- layout glue in XLA (input-sized): pad + space-to-depth(2) + fold dh ----
    x_nhwc = jnp.transpose(x, (0, 2, 3, 1))
    x_pad = jnp.pad(x_nhwc, ((0, 0), (1, 1), (1, 1), (0, 0)))
    x_s2d = x_pad.reshape(N, H2, 2, W2, 2, Cin)
    x_s2d = jnp.transpose(x_s2d, (0, 1, 3, 2, 4, 5)).reshape(N, H2, W2, C4)
    x_s2d = x_s2d.astype(compute_dtype)
    # TODO(synk): the 1-row halo is duplicated here (~2x input HBM); an
    # overlapping element-offset BlockSpec could remove the duplication.
    x_db = jnp.concatenate([x_s2d[:, :-1], x_s2d[:, 1:]], axis=-1)   # (N,Hout,W2,C8)

    # weight (Cout, Cin, 4, 4) -> (2, C8, Cout); contraction ordered (dh, rh, rw, ci).
    w_hw = jnp.transpose(weight, (2, 3, 1, 0)).reshape(2, 2, 2, 2, Cin, Cout)
    w_k = jnp.transpose(w_hw, (2, 0, 1, 3, 4, 5)).reshape(2, C8, Cout)
    w_k = w_k.astype(compute_dtype)
    b_f32 = bias.astype(jnp.float32).reshape(1, Cout)

    vmem_limit = _vmem_limit_bytes()
    resident = 2 * (2 * C8) * Cout * in_bytes + 8 * Cout * 4 + (1 << 16)
    budget = max(vmem_limit // 2 - resident, 1 << 20)
    TH = _pick_row_tile(Hout, Wout, C8, Cout, in_bytes, 4, budget)
    T = Hout // TH
    TP = TH * Wout

    x_spec = pl.BlockSpec((None, TH, W2, C8), lambda n, t: (n, t, 0, 0))
    w_spec = pl.BlockSpec((2, C8, Cout), lambda n, t: (0, 0, 0))
    b_spec = pl.BlockSpec((1, Cout), lambda n, t: (0, 0))
    tile_out_spec = pl.BlockSpec((None, TP, Cout), lambda n, t: (n, t, 0))
    params_par = pltpu.CompilerParams(
        dimension_semantics=("parallel", "parallel"),
        vmem_limit_bytes=vmem_limit)
    params_arb = pltpu.CompilerParams(
        dimension_semantics=("parallel", "arbitrary"),
        vmem_limit_bytes=vmem_limit)

    if not apply_norm:
        kernel = functools.partial(_conv_act_kernel, th=TH, wout=Wout)
        out = pl.pallas_call(
            kernel,
            out_shape=jax.ShapeDtypeStruct((N, P, Cout), out_dtype),
            grid_spec=pltpu.PrefetchScalarGridSpec(
                num_scalar_prefetch=0, grid=(N, T),
                in_specs=[x_spec, w_spec, b_spec],
                out_specs=tile_out_spec),
            compiler_params=params_par,
        )(x_db, w_k, b_f32)
    else:
        fused_bytes = (_tile_footprint(TH, Wout, C8, Cout, in_bytes, 4)
                       + resident
                       + 2 * P * Cout * out_bytes      # resident per-image output block
                       + 2 * TP * Cout * 4)            # finalize temporaries
        use_fused = (not force_two_pass) and fused_bytes <= vmem_limit * 8 // 10

        if use_fused:
            # Single fused pass: conv + streaming stats + in-place normalize/act.
            kernel = functools.partial(_fused_norm_kernel, th=TH, wout=Wout,
                                       inv_p=1.0 / P)
            out = pl.pallas_call(
                kernel,
                out_shape=jax.ShapeDtypeStruct((N, P, Cout), out_dtype),
                grid_spec=pltpu.PrefetchScalarGridSpec(
                    num_scalar_prefetch=0, grid=(N, T),
                    in_specs=[x_spec, w_spec, b_spec],
                    out_specs=pl.BlockSpec((None, P, Cout), lambda n, t: (n, 0, 0)),
                    scratch_shapes=[pltpu.VMEM((1, Cout), jnp.float32),
                                    pltpu.VMEM((1, Cout), jnp.float32)]),
                compiler_params=params_arb,
            )(x_db, w_k, b_f32)
        else:
            # Two-pass fallback.  Intermediate y is bf16 unless an f32 compute
            # path is requested (keeps the tight f32 validation exact).
            y_dtype = (jnp.float32
                       if jnp.dtype(compute_dtype) == jnp.dtype(jnp.float32)
                       else jnp.bfloat16)
            kernel = functools.partial(_conv_stats_kernel, th=TH, wout=Wout)
            y, stats = pl.pallas_call(
                kernel,
                out_shape=(jax.ShapeDtypeStruct((N, P, Cout), y_dtype),
                           jax.ShapeDtypeStruct((N, T, 2, Cout), jnp.float32)),
                grid_spec=pltpu.PrefetchScalarGridSpec(
                    num_scalar_prefetch=0, grid=(N, T),
                    in_specs=[x_spec, w_spec, b_spec],
                    out_specs=[tile_out_spec,
                               pl.BlockSpec((None, None, 2, Cout),
                                            lambda n, t: (n, t, 0, 0))]),
                compiler_params=params_par,
            )(x_db, w_k, b_f32)

            # Tiny per-image reduction + rsqrt in XLA, folded into (scale, shift).
            sums = jnp.sum(stats[:, :, 0, :], axis=1)
            sumsq = jnp.sum(stats[:, :, 1, :], axis=1)
            mean = sums / P
            var = jnp.maximum(sumsq / P - mean * mean, 0.0)   # biased (InstanceNorm2d)
            rstd = lax.rsqrt(var + EPS)
            scale_shift = jnp.stack([rstd, -mean * rstd], axis=1)   # (N, 2, Cout)

            out = pl.pallas_call(
                _scale_shift_act_kernel,
                out_shape=jax.ShapeDtypeStruct((N, P, Cout), out_dtype),
                grid_spec=pltpu.PrefetchScalarGridSpec(
                    num_scalar_prefetch=0, grid=(N, T),
                    in_specs=[tile_out_spec,
                              pl.BlockSpec((None, 2, Cout), lambda n, t: (n, 0, 0))],
                    out_specs=tile_out_spec),
                compiler_params=params_par,
            )(y, scale_shift)

    out = out.reshape(N, Hout, Wout, Cout)
    return jnp.transpose(out, (0, 3, 1, 2))   # back to NCHW


def _reference(x, weight, bias, *, stride=2, apply_norm=True):
    y = lax.conv_general_dilated(
        x, weight, (stride, stride), ((1, 1), (1, 1)),
        dimension_numbers=("NCHW", "OIHW", "NCHW"))
    y = y + bias.reshape(1, -1, 1, 1)
    if apply_norm:
        mean = jnp.mean(y, axis=(2, 3), keepdims=True)
        var = jnp.mean((y - mean) ** 2, axis=(2, 3), keepdims=True)
        y = (y - mean) * lax.rsqrt(var + EPS)
    return jnp.where(y >= 0.0, y, NEG_SLOPE * y)


if __name__ == "__main__":
    key = jax.random.PRNGKey(0)
    kx, kw, kb = jax.random.split(key, 3)

    N, Cin, H, W = 2, 4, 16, 16
    Cout = 8

    x = jax.random.normal(kx, (N, Cin, H, W), dtype=jnp.float32)
    fan_in = Cin * 4 * 4
    bound = 1.0 / (fan_in ** 0.5)
    weight = jax.random.uniform(kw, (Cout, Cin, 4, 4), jnp.float32, -bound, bound)
    bias = jax.random.uniform(kb, (Cout,), jnp.float32, -bound, bound)

    ref = _reference(x, weight, bias, apply_norm=True)

    # Fused single-pass norm path, f32 compute: tight check of the lowering.
    out_f32 = jax.block_until_ready(
        block_forward(x, weight, bias, apply_norm=True, compute_dtype=jnp.float32))
    assert out_f32.shape == (N, Cout, H // 2, W // 2), out_f32.shape
    assert jnp.allclose(out_f32, ref, atol=1e-4, rtol=1e-4), float(
        jnp.max(jnp.abs(out_f32 - ref)))

    # Fused path with default bf16 MXU operands (f32 accumulation / stats).
    out_bf16 = jax.block_until_ready(block_forward(x, weight, bias, apply_norm=True))
    assert out_bf16.shape == (N, Cout, H // 2, W // 2), out_bf16.shape
    assert jnp.allclose(out_bf16, ref, atol=5e-2, rtol=5e-2), float(
        jnp.max(jnp.abs(out_bf16 - ref)))

    # Two-pass fallback path explicitly exercised (f32 compute, tight check).
    out_2p = jax.block_until_ready(
        block_forward(x, weight, bias, apply_norm=True,
                      compute_dtype=jnp.float32, force_two_pass=True))
    assert jnp.allclose(out_2p, ref, atol=1e-4, rtol=1e-4), float(
        jnp.max(jnp.abs(out_2p - ref)))

    # apply_norm=False path (conv + bias + LeakyReLU fused in a single pass).
    ref2 = _reference(x, weight, bias, apply_norm=False)
    out2 = jax.block_until_ready(
        block_forward(x, weight, bias, apply_norm=False, compute_dtype=jnp.float32))
    assert jnp.allclose(out2, ref2, atol=1e-4, rtol=1e-4), float(
        jnp.max(jnp.abs(out2 - ref2)))

    print("KERNEL_OK")
</pallas_src>

<mosaic_0001>
module attributes {stable_mosaic.version = 11 : i64} {
  func.func @_fused_norm_kernel(%arg0: i32, %arg1: i32, %arg2: memref<1x8x9x32xf32, #tpu.memory_space<vmem>>, %arg3: memref<2x32x8xf32, #tpu.memory_space<vmem>>, %arg4: memref<1x8xf32, #tpu.memory_space<vmem>>, %arg5: memref<1x64x8xf32, #tpu.memory_space<vmem>>, %arg6: memref<1x8xf32, #tpu.memory_space<vmem>>, %arg7: memref<1x8xf32, #tpu.memory_space<vmem>>) attributes {dimension_semantics = [#tpu.dimension_semantics<parallel>, #tpu.dimension_semantics<arbitrary>], iteration_bounds = array<i64: 2, 1>, scalar_prefetch = 0 : i64, scratch_operands = 2 : i64, tpu.core_type = #tpu.core_type<tc>, window_params = [{transform_indices = @transform_0, window_bounds = array<i64: 1, 8, 9, 32>}, {pipeline_mode = #tpu.pipeline_mode<synchronous>, transform_indices = @transform_1, window_bounds = array<i64: 2, 32, 8>}, {pipeline_mode = #tpu.pipeline_mode<synchronous>, transform_indices = @transform_2, window_bounds = array<i64: 1, 8>}, {transform_indices = @transform_3, window_bounds = array<i64: 1, 64, 8>}]} {
    %c0 = arith.constant 0 : index
    %c0_0 = arith.constant 0 : index
    %c0_1 = arith.constant 0 : index
    %c0_2 = arith.constant 0 : index
    %0 = vector.load %arg2[%c0, %c0_0, %c0_1, %c0_2] : memref<1x8x9x32xf32, #tpu.memory_space<vmem>>, vector<1x8x9x32xf32>
    %1 = vector.shape_cast %0 : vector<1x8x9x32xf32> to vector<8x9x32xf32>
    %2 = vector.extract_strided_slice %1 {offsets = [0, 0, 0], sizes = [8, 8, 32], strides = [1, 1, 1]} : vector<8x9x32xf32> to vector<8x8x32xf32>
    %3 = vector.shape_cast %2 : vector<8x8x32xf32> to vector<64x32xf32>
    %4 = vector.extract_strided_slice %1 {offsets = [0, 1, 0], sizes = [8, 8, 32], strides = [1, 1, 1]} : vector<8x9x32xf32> to vector<8x8x32xf32>
    %5 = vector.shape_cast %4 : vector<8x8x32xf32> to vector<64x32xf32>
    %c0_3 = arith.constant 0 : index
    %c0_4 = arith.constant 0 : index
    %c0_5 = arith.constant 0 : index
    %6 = vector.load %arg3[%c0_3, %c0_4, %c0_5] : memref<2x32x8xf32, #tpu.memory_space<vmem>>, vector<1x32x8xf32>
    %7 = vector.shape_cast %6 : vector<1x32x8xf32> to vector<32x8xf32>
    %cst = arith.constant dense<0.000000e+00> : vector<64x8xf32>
    %8 = tpu.matmul %3, %7, %cst {dimension_numbers = #tpu.dot_dimension_numbers<[1], [0], [0], [1], [0, 0, 1, 1], [], []>} : vector<64x32xf32>, vector<32x8xf32>, vector<64x8xf32> -> vector<64x8xf32>
    %c1 = arith.constant 1 : index
    %c0_6 = arith.constant 0 : index
    %c0_7 = arith.constant 0 : index
    %9 = vector.load %arg3[%c1, %c0_6, %c0_7] : memref<2x32x8xf32, #tpu.memory_space<vmem>>, vector<1x32x8xf32>
    %10 = vector.shape_cast %9 : vector<1x32x8xf32> to vector<32x8xf32>
    %cst_8 = arith.constant dense<0.000000e+00> : vector<64x8xf32>
    %11 = tpu.matmul %5, %10, %cst_8 {dimension_numbers = #tpu.dot_dimension_numbers<[1], [0], [0], [1], [0, 0, 1, 1], [], []>} : vector<64x32xf32>, vector<32x8xf32>, vector<64x8xf32> -> vector<64x8xf32>
    %12 = arith.addf %8, %11 : vector<64x8xf32>
    %c0_9 = arith.constant 0 : index
    %c0_10 = arith.constant 0 : index
    %13 = vector.load %arg4[%c0_9, %c0_10] : memref<1x8xf32, #tpu.memory_space<vmem>>, vector<1x8xf32>
    %14 = vector.broadcast %13 : vector<1x8xf32> to vector<64x8xf32>
    %15 = arith.addf %12, %14 : vector<64x8xf32>
    %c0_i32 = arith.constant 0 : i32
    %16 = arith.cmpi eq, %arg1, %c0_i32 : i32
    %17 = arith.extui %16 : i1 to i32
    %c0_i32_11 = arith.constant 0 : i32
    %18 = arith.cmpi ne, %17, %c0_i32_11 : i32
    scf.if %18 {
      %cst_26 = arith.constant 0.000000e+00 : f32
      %39 = vector.broadcast %cst_26 : f32 to vector<1x8xf32>
      %c0_27 = arith.constant 0 : index
      %c0_28 = arith.constant 0 : index
      %40 = vector.load %arg6[%c0_27, %c0_28] : memref<1x8xf32, #tpu.memory_space<vmem>>, vector<1x8xf32>
      tpu.vector_store %arg6[%c0_27, %c0_28], %39 {strides = array<i32>} : memref<1x8xf32, #tpu.memory_space<vmem>>, vector<1x8xf32>,
      %cst_29 = arith.constant 0.000000e+00 : f32
      %41 = vector.broadcast %cst_29 : f32 to vector<1x8xf32>
      %c0_30 = arith.constant 0 : index
      %c0_31 = arith.constant 0 : index
      %42 = vector.load %arg7[%c0_30, %c0_31] : memref<1x8xf32, #tpu.memory_space<vmem>>, vector<1x8xf32>
      tpu.vector_store %arg7[%c0_30, %c0_31], %41 {strides = array<i32>} : memref<1x8xf32, #tpu.memory_space<vmem>>, vector<1x8xf32>,
    } else {
    }
    %c0_12 = arith.constant 0 : index
    %c0_13 = arith.constant 0 : index
    %19 = vector.load %arg6[%c0_12, %c0_13] : memref<1x8xf32, #tpu.memory_space<vmem>>, vector<1x8xf32>
    %cst_14 = arith.constant dense<0.000000e+00> : vector<8xf32>
    %20 = vector.multi_reduction <add>, %15, %cst_14 [0] : vector<64x8xf32> to vector<8xf32>
    %21 = vector.shape_cast %20 : vector<8xf32> to vector<1x8xf32>
    %22 = arith.addf %19, %21 : vector<1x8xf32>
    %c0_15 = arith.constant 0 : index
    %c0_16 = arith.constant 0 : index
    %23 = vector.load %arg6[%c0_15, %c0_16] : memref<1x8xf32, #tpu.memory_space<vmem>>, vector<1x8xf32>
    tpu.vector_store %arg6[%c0_15, %c0_16], %22 {strides = array<i32>} : memref<1x8xf32, #tpu.memory_space<vmem>>, vector<1x8xf32>,
    %c0_17 = arith.constant 0 : index
    %c0_18 = arith.constant 0 : index
    %24 = vector.load %arg7[%c0_17, %c0_18] : memref<1x8xf32, #tpu.memory_space<vmem>>, vector<1x8xf32>
    %25 = arith.mulf %15, %15 : vector<64x8xf32>
    %cst_19 = arith.constant dense<0.000000e+00> : vector<8xf32>
    %26 = vector.multi_reduction <add>, %25, %cst_19 [0] : vector<64x8xf32> to vector<8xf32>
    %27 = vector.shape_cast %26 : vector<8xf32> to vector<1x8xf32>
    %28 = arith.addf %24, %27 : vector<1x8xf32>
    %c0_20 = arith.constant 0 : index
    %c0_21 = arith.constant 0 : index
    %29 = vector.load %arg7[%c0_20, %c0_21] : memref<1x8xf32, #tpu.memory_space<vmem>>, vector<1x8xf32>
    tpu.vector_store %arg7[%c0_20, %c0_21], %28 {strides = array<i32>} : memref<1x8xf32, #tpu.memory_space<vmem>>, vector<1x8xf32>,
    %c64_i32 = arith.constant 64 : i32
    %30 = arith.muli %arg1, %c64_i32 : i32
    %31 = tpu.assume_multiple %30, 8 : i32
    %c0_22 = arith.constant 0 : index
    %32 = arith.index_cast %31 : i32 to index
    %c0_23 = arith.constant 0 : index
    %33 = vector.load %arg5[%c0_22, %32, %c0_23] : memref<1x64x8xf32, #tpu.memory_space<vmem>>, vector<1x64x8xf32>
    %34 = vector.shape_cast %33 : vector<1x64x8xf32> to vector<64x8xf32>
    %35 = vector.shape_cast %15 : vector<64x8xf32> to vector<1x64x8xf32>
    tpu.vector_store %arg5[%c0_22, %32, %c0_23], %35 {strides = array<i32>} : memref<1x64x8xf32, #tpu.memory_space<vmem>>, vector<1x64x8xf32>,
    %c0_i32_24 = arith.constant 0 : i32
    %36 = arith.cmpi eq, %arg1, %c0_i32_24 : i32
    %37 = arith.extui %36 : i1 to i32
    %c0_i32_25 = arith.constant 0 : i32
    %38 = arith.cmpi ne, %37, %c0_i32_25 : i32
    scf.if %38 {
      %c0_26 = arith.constant 0 : index
      %c0_27 = arith.constant 0 : index
      %39 = vector.load %arg6[%c0_26, %c0_27] : memref<1x8xf32, #tpu.memory_space<vmem>>, vector<1x8xf32>
      %cst_28 = arith.constant 1.562500e-02 : f32
      %40 = vector.broadcast %cst_28 : f32 to vector<1x8xf32>
      %41 = arith.mulf %39, %40 : vector<1x8xf32>
      %c0_29 = arith.constant 0 : index
      %c0_30 = arith.constant 0 : index
      %42 = vector.load %arg7[%c0_29, %c0_30] : memref<1x8xf32, #tpu.memory_space<vmem>>, vector<1x8xf32>
      %cst_31 = arith.constant 1.562500e-02 : f32
      %43 = vector.broadcast %cst_31 : f32 to vector<1x8xf32>
      %44 = arith.mulf %42, %43 : vector<1x8xf32>
      %45 = arith.mulf %41, %41 : vector<1x8xf32>
      %46 = arith.subf %44, %45 : vector<1x8xf32>
      %cst_32 = arith.constant 0.000000e+00 : f32
      %47 = vector.broadcast %cst_32 : f32 to vector<1x8xf32>
      %48 = arith.maximumf %46, %47 : vector<1x8xf32>
      %cst_33 = arith.constant 9.99999974E-6 : f32
      %49 = vector.broadcast %cst_33 : f32 to vector<1x8xf32>
      %50 = arith.addf %48, %49 : vector<1x8xf32>
      %51 = math.rsqrt %50 : vector<1x8xf32>
      %cst_34 = arith.constant 0.000000e+00 : f32
      %52 = vector.broadcast %cst_34 : f32 to vector<1x8xf32>
      %53 = arith.subf %52, %41 : vector<1x8xf32>
      %54 = arith.mulf %53, %51 : vector<1x8xf32>
      %c0_i32_35 = arith.constant 0 : i32
      %c64_i32_36 = arith.constant 64 : i32
      %55 = arith.muli %c0_i32_35, %c64_i32_36 : i32
      %56 = tpu.assume_multiple %55, 8 : i32
      %c0_37 = arith.constant 0 : index
      %57 = arith.index_cast %56 : i32 to index
      %c0_38 = arith.constant 0 : index
      %58 = vector.load %arg5[%c0_37, %57, %c0_38] : memref<1x64x8xf32, #tpu.memory_space<vmem>>, vector<1x64x8xf32>
      %59 = vector.shape_cast %58 : vector<1x64x8xf32> to vector<64x8xf32>
      %60 = vector.broadcast %51 : vector<1x8xf32> to vector<64x8xf32>
      %61 = arith.mulf %59, %60 : vector<64x8xf32>
      %62 = vector.broadcast %54 : vector<1x8xf32> to vector<64x8xf32>
      %63 = arith.addf %61, %62 : vector<64x8xf32>
      %cst_39 = arith.constant 0.000000e+00 : f32
      %64 = vector.broadcast %cst_39 : f32 to vector<64x8xf32>
      %65 = arith.cmpf oge, %63, %64 : vector<64x8xf32>
      %cst_40 = arith.constant 2.000000e-01 : f32
      %66 = vector.broadcast %cst_40 : f32 to vector<64x8xf32>
      %67 = arith.mulf %66, %63 : vector<64x8xf32>
      %68 = arith.select %65, %63, %67 : vector<64x8xi1>, vector<64x8xf32>
      %c0_41 = arith.constant 0 : index
      %69 = arith.index_cast %56 : i32 to index
      %c0_42 = arith.constant 0 : index
      %70 = vector.load %arg5[%c0_41, %69, %c0_42] : memref<1x64x8xf32, #tpu.memory_space<vmem>>, vector<1x64x8xf32>
      %71 = vector.shape_cast %70 : vector<1x64x8xf32> to vector<64x8xf32>
      %72 = vector.shape_cast %68 : vector<64x8xf32> to vector<1x64x8xf32>
      tpu.vector_store %arg5[%c0_41, %69, %c0_42], %72 {strides = array<i32>} : memref<1x64x8xf32, #tpu.memory_space<vmem>>, vector<1x64x8xf32>,
      %c1_i32 = arith.constant 1 : i32
    } else {
    }
    return
  }
  func.func @transform_0(%arg0: i32, %arg1: i32) -> (i32, i32, i32, i32) {
    %c0_i32 = arith.constant 0 : i32
    %c0_i32_0 = arith.constant 0 : i32
    %c0_i32_1 = arith.constant 0 : i32
    return %arg0, %arg1, %c0_i32, %c0_i32_0 : i32, i32, i32, i32
  }
  func.func @transform_1(%arg0: i32, %arg1: i32) -> (i32, i32, i32) {
    %c0_i32 = arith.constant 0 : i32
    %c0_i32_0 = arith.constant 0 : i32
    %c0_i32_1 = arith.constant 0 : i32
    %c0_i32_2 = arith.constant 0 : i32
    return %c0_i32, %c0_i32_0, %c0_i32_1 : i32, i32, i32
  }
  func.func @transform_2(%arg0: i32, %arg1: i32) -> (i32, i32) {
    %c0_i32 = arith.constant 0 : i32
    %c0_i32_0 = arith.constant 0 : i32
    %c0_i32_1 = arith.constant 0 : i32
    return %c0_i32, %c0_i32_0 : i32, i32
  }
  func.func @transform_3(%arg0: i32, %arg1: i32) -> (i32, i32, i32) {
    %c0_i32 = arith.constant 0 : i32
    %c0_i32_0 = arith.constant 0 : i32
    %c0_i32_1 = arith.constant 0 : i32
    return %arg0, %c0_i32, %c0_i32_0 : i32, i32, i32
  }
}

</mosaic_0001>

<llo_original>
// kernel: tpu_custom_call.1
$region0: #{tpu_custom_call.1}
  #allocation0 [shape = 'u32[]', space=smem, size = 0x4, offset = 0x4, fixed_abs, tag = 'smem constant byte address 0x4 - core index']
  #allocation1 [shape = 'u32[144,128]{1,0:T(1,128)}', space=vmem, size = 0x12000, scoped, tag = 'internal scratch']
  #allocation2 [shape = 'f32[1,8]{1,0:T(1,128)}', space=vmem, size = 0x200, scoped, tag = 'scratch operand']
  #allocation3 [shape = 'f32[1,8]{1,0:T(1,128)}', space=vmem, size = 0x200, scoped, tag = 'scratch operand']
  %s0 = inlined_call_operand.vmem [shape: f32[2,8,9,32], index: 0, kind: input, shape index: {}]
  %s1 = inlined_call_operand.vmem [shape: f32[2,32,8], index: 1, kind: input, shape index: {}]
  %s2 = inlined_call_operand.vmem [shape: f32[1,8], index: 2, kind: input, shape index: {}]
  %s3 = inlined_call_operand.vmem [shape: f32[2,64,8], index: 3, kind: output, shape index: {}]
  %s4 = sld [smem:[#allocation0]]
  $region53: #{tpu_custom_call.1} parent=0
    _
  %s6 = ssub.s32 1, %s4
  %s7 = scalar_select 0, %s6, %s4
  loop: start=0, step=1, limit=4
  $region2: #{tpu_custom_call.1} parent=0 // loop_pre_header
    _
  $region3: #{tpu_custom_call.1} parent=0 // loop_header
    %s9 = sphi 0, %s13
    %p10 = scmp.ge.s32.totalorder %s9, 4
    %s16 = sphi 0, %s28
    %s17 = sphi 0, %s24
    %s18 = sphi 0, %s16
    %s19 = sphi 0, %s17
    %s20 = sphi 0, %s18
    %s21 = sphi 0, %s19
    %s33 = sphi 0, %s35
    %s36 = sphi 0, %s33
    %s37 = sphi 0, %s36
    %s53 = sphi 0, %s37
    %s57 = sphi 0, %s57
    %s59 = sphi 0, %s57
    %s60 = sphi 0, %s59
    %s74 = sphi 0, %s60
    %s78 = sphi 0, %s78
    %s80 = sphi 0, %s78
    %s81 = sphi 0, %s80
    %s95 = sphi 0, %s81
    %s101 = sphi 0, %s103
    %s104 = sphi 0, %s101
    %s105 = sphi 0, %s104
    %s121 = sphi 0, %s105
  $region4: #{tpu_custom_call.1} parent=0 // loop_header_branch
    %12 = sbr.rel (%p10) target = $region8
  $region5: #{tpu_custom_call.1} parent=0 // loop_body
    %s14 = ssub.s32 %s9, 1
    %s15 = ssub.s32 %s9, 2
    %s22 = sadd.s32 1, %s17
    %p23 = scmp.ge.s32.totalorder %s22, 1
    %s24 = scalar_select %p23, 0, %s22
    %s25 = sadd.s32 1, %s16
    %s26 = scalar_select %p23, %s25, %s16
    %p27 = scmp.ge.s32.totalorder %s26, 2
    %s28 = scalar_select %p27, 0, %s26
    %s29 = ssub.s32 %s16, %s28
    %s30 = ssub.s32 %s17, %s24
    %s31 = sor.u32 %s29, %s30
    %p32 = scmp.eq.s32.totalorder %s31, 0
    %s34 = sadd.s32 %s33, 1
    %s35 = scalar_select %p32, %s33, %s34
    %p38 = pneg %p32
    %p39 = scmp.eq.s32.totalorder %s9, 1
    %p40 = por %p38, %p39
    %p41 = scmp.ne.s32.totalorder %s33, %s36
    %p42 = scmp.eq.s32.totalorder %s9, 0
    %p43 = por %p41, %p42
    %p44 = scmp.ne.s32.totalorder %s33, %s36
    %p45 = scmp.eq.s32.totalorder %s14, 1
    %p46 = por %p44, %p45
    %p47 = scmp.ne.s32.totalorder %s36, %s37
    %p48 = scmp.eq.s32.totalorder %s14, 0
    %p49 = por %p47, %p48
    %p50 = scmp.ne.s32.totalorder %s36, %s37
    %p51 = scmp.eq.s32.totalorder %s15, 1
    %p52 = por %p50, %p51
    %p54 = scmp.ne.s32.totalorder %s37, %s53
    %p55 = scmp.eq.s32.totalorder %s15, 0
    %p56 = por %p54, %p55
    %s58 = sadd.s32 %s57, 1
    %p61 = scmp.eq.s32.totalorder %s9, 1
    %p62 = scmp.ne.s32.totalorder %s57, %s59
    %p63 = scmp.eq.s32.totalorder %s9, 0
    %p64 = por %p62, %p63
    %p65 = scmp.ne.s32.totalorder %s57, %s59
    %p66 = scmp.eq.s32.totalorder %s14, 1
    %p67 = por %p65, %p66
    %p68 = scmp.ne.s32.totalorder %s59, %s60
    %p69 = scmp.eq.s32.totalorder %s14, 0
    %p70 = por %p68, %p69
    %p71 = scmp.ne.s32.totalorder %s59, %s60
    %p72 = scmp.eq.s32.totalorder %s15, 1
    %p73 = por %p71, %p72
    %p75 = scmp.ne.s32.totalorder %s60, %s74
    %p76 = scmp.eq.s32.totalorder %s15, 0
    %p77 = por %p75, %p76
    %s79 = sadd.s32 %s78, 1
    %p82 = scmp.eq.s32.totalorder %s9, 1
    %p83 = scmp.ne.s32.totalorder %s78, %s80
    %p84 = scmp.eq.s32.totalorder %s9, 0
    %p85 = por %p83, %p84
    %p86 = scmp.ne.s32.totalorder %s78, %s80
    %p87 = scmp.eq.s32.totalorder %s14, 1
    %p88 = por %p86, %p87
    %p89 = scmp.ne.s32.totalorder %s80, %s81
    %p90 = scmp.eq.s32.totalorder %s14, 0
    %p91 = por %p89, %p90
    %p92 = scmp.ne.s32.totalorder %s80, %s81
    %p93 = scmp.eq.s32.totalorder %s15, 1
    %p94 = por %p92, %p93
    %p96 = scmp.ne.s32.totalorder %s81, %s95
    %p97 = scmp.eq.s32.totalorder %s15, 0
    %p98 = por %p96, %p97
    %s99 = ssub.s32 %s16, %s28
    %p100 = scmp.eq.s32.totalorder %s99, 0
    %s102 = sadd.s32 %s101, 1
    %s103 = scalar_select %p100, %s101, %s102
    %p106 = pneg %p100
    %p107 = scmp.eq.s32.totalorder %s9, 1
    %p108 = por %p106, %p107
    %p109 = scmp.ne.s32.totalorder %s101, %s104
    %p110 = scmp.eq.s32.totalorder %s9, 0
    %p111 = por %p109, %p110
    %p112 = scmp.ne.s32.totalorder %s101, %s104
    %p113 = scmp.eq.s32.totalorder %s14, 1
    %p114 = por %p112, %p113
    %p115 = scmp.ne.s32.totalorder %s104, %s105
    %p116 = scmp.eq.s32.totalorder %s14, 0
    %p117 = por %p115, %p116
    %p118 = scmp.ne.s32.totalorder %s104, %s105
    %p119 = scmp.eq.s32.totalorder %s15, 1
    %p120 = por %p118, %p119
    %p122 = scmp.ne.s32.totalorder %s105, %s121
    %p123 = scmp.eq.s32.totalorder %s15, 0
    %p124 = por %p122, %p123
    %p125 = scmp.le.s32.totalorder 1, %s9
    %p126 = scmp.lt.s32.totalorder %s9, 3
    %p127 = pnand %p125, %p126
    %p128 = pneg %p127
    // Predicated region
    $region9: #{tpu_custom_call.1} parent=5 // pred_check
      _
    $region10: #{tpu_custom_call.1} parent=5 // pred_check_branch
      %130 = sbr.rel (%p127) target = $region12
    $region11: #{tpu_custom_call.1} parent=5 // pred_region
      %s131 = ssub.s32 %s9, 1
      // Predicated region
      $region13: #{tpu_custom_call.1} parent=11 // pred_check
        %p132 = pneg %p70
      $region14: #{tpu_custom_call.1} parent=11 // pred_check_branch
        %134 = sbr.rel (%p132) target = $region16
      $region15: #{tpu_custom_call.1} parent=11 // pred_region
        _
      $region16: #{tpu_custom_call.1} parent=11 // pred_fallthru
        _
      // Predicated region
      $region17: #{tpu_custom_call.1} parent=11 // pred_check
        %p135 = pneg %p91
      $region18: #{tpu_custom_call.1} parent=11 // pred_check_branch
        %137 = sbr.rel (%p135) target = $region20
      $region19: #{tpu_custom_call.1} parent=11 // pred_region
        _
      $region20: #{tpu_custom_call.1} parent=11 // pred_fallthru
        _
    $region12: #{tpu_custom_call.1} parent=5 // pred_fallthru
      _
    %p138 = scmp.lt.s32.totalorder %s9, 2
    // Predicated region
    $region21: #{tpu_custom_call.1} parent=5 // pred_check
      %p139 = pneg %p138
    $region22: #{tpu_custom_call.1} parent=5 // pred_check_branch
      %141 = sbr.rel (%p139) target = $region24
    $region23: #{tpu_custom_call.1} parent=5 // pred_region
      // Predicated region
      $region25: #{tpu_custom_call.1} parent=23 // pred_check
        %p142 = pneg %p43
      $region26: #{tpu_custom_call.1} parent=23 // pred_check_branch
        %144 = sbr.rel (%p142) target = $region28
      $region27: #{tpu_custom_call.1} parent=23 // pred_region
        %s145 = smul.u32 8, %s17
        %p146 = scmp.lt.s32.totalorder %s16, 1
        %s147 = scalar_select %p146, %s16, 1
        %p148 = scmp.lt.s32.totalorder %s145, 7
        %s149 = scalar_select %p148, %s145, 7
        %s150 = smul.addr %s149, 2
        %s151 = smul.addr %s147, 16
        %s152 = sadd.s32 %s150, %s151
        %s153 = smul.addr %s152, 8
        %s154 = scalar_lea.vmem %s0, %s153
        %s155 = smul.u32 8, %s17
      $region28: #{tpu_custom_call.1} parent=23 // pred_fallthru
        _
    $region24: #{tpu_custom_call.1} parent=5 // pred_fallthru
      _
    %p156 = scmp.le.s32.totalorder 1, %s9
    %p157 = scmp.lt.s32.totalorder %s9, 3
    %p158 = pnand %p156, %p157
    %p159 = pneg %p158
    // Predicated region
    $region29: #{tpu_custom_call.1} parent=5 // pred_check
      _
    $region30: #{tpu_custom_call.1} parent=5 // pred_check_branch
      %161 = sbr.rel (%p158) target = $region32
    $region31: #{tpu_custom_call.1} parent=5 // pred_region
      %s162 = ssub.s32 %s9, 1
      %s163 = smul.u32 8, %s19
      %p164 = scmp.lt.s32.totalorder %s18, 1
      %s165 = scalar_select %p164, %s18, 1
      %p166 = scmp.lt.s32.totalorder %s163, 7
      %s167 = scalar_select %p166, %s163, 7
      %s168 = smul.addr %s167, 2
      %s169 = smul.addr %s165, 16
      %s170 = sadd.s32 %s168, %s169
      %s171 = smul.addr %s170, 8
      %s172 = scalar_lea.vmem %s0, %s171
      %p173 = pneg %p49
      %p174 = pneg %p46
      %p175 = pneg %p70
      %p176 = pneg %p67
      %p177 = pneg %p91
      %p178 = pneg %p88
      %p179 = pneg %p117
      %p180 = pneg %p114
      %p181 = scmp.lt.s32.totalorder %s18, 1
      %s182 = scalar_select %p181, %s18, 1
      %s183 = smul.addr %s182, 8
      %s184 = smul.addr %s183, 8
      %s185 = scalar_lea.vmem %s3, %s184
      %s186 = smul.u32 8, %s19
      %p187 = scmp.lt.s32.totalorder %s18, 1
      %s188 = scalar_select %p187, %s18, 1
      %p189 = scmp.lt.s32.totalorder %s186, 7
      %s190 = scalar_select %p189, %s186, 7
      %s191 = smul.addr %s190, 2
      %s192 = smul.addr %s188, 16
      %s193 = sadd.s32 %s191, %s192
      %s194 = smul.addr %s193, 8
      %s195 = scalar_lea.vmem %s0, %s194
      %s196 = smul.u32 8, %s19
      %p197 = scmp.lt.s32.totalorder %s18, 1
      %s198 = scalar_select %p197, %s18, 1
      %s199 = smul.addr %s198, 8
      %s200 = smul.addr %s199, 8
      %s201 = scalar_lea.vmem %s3, %s200
      %v202 = vld [vmem:[%s195] sm:$0xff]
      %v203 = vld [vmem:[%s195 + $0x8] sm:$0x1]
      %v204 = vld [vmem:[%s195 + $0x10] sm:$0xff]
      %v205 = vld [vmem:[%s195 + $0x18] sm:$0x1]
      %v206 = vld [vmem:[%s195 + $0x20] sm:$0xff]
      %v207 = vld [vmem:[%s195 + $0x28] sm:$0x1]
      %v208 = vld [vmem:[%s195 + $0x30] sm:$0xff]
      %v209 = vld [vmem:[%s195 + $0x38] sm:$0x1]
      %v210 = vld [vmem:[%s195 + $0x40] sm:$0xff]
      %v211 = vld [vmem:[%s195 + $0x48] sm:$0x1]
      %v212 = vld [vmem:[%s195 + $0x50] sm:$0xff]
      %v213 = vld [vmem:[%s195 + $0x58] sm:$0x1]
      %v214 = vld [vmem:[%s195 + $0x60] sm:$0xff]
      %v215 = vld [vmem:[%s195 + $0x68] sm:$0x1]
      %v216 = vld [vmem:[%s195 + $0x70] sm:$0xff]
      %v217 = vld [vmem:[%s195 + $0x78] sm:$0x1]
      %vm234 = vcmask 1046528
      %v235 = vrot.slane %v202, 1
      %v236 = vrot.slane %v203, 1
      %v237 = vsel %vm234, %v235, %v236
      %v238 = vrot.slane %v204, 1
      %v239 = vrot.slane %v205, 1
      %v240 = vsel %vm234, %v238, %v239
      %v241 = vrot.slane %v206, 1
      %v242 = vrot.slane %v207, 1
      %v243 = vsel %vm234, %v241, %v242
      %v244 = vrot.slane %v208, 1
      %v245 = vrot.slane %v209, 1
      %v246 = vsel %vm234, %v244, %v245
      %v247 = vrot.slane %v210, 1
      %v248 = vrot.slane %v211, 1
      %v249 = vsel %vm234, %v247, %v248
      %v250 = vrot.slane %v212, 1
      %v251 = vrot.slane %v213, 1
      %v252 = vsel %vm234, %v250, %v251
      %v253 = vrot.slane %v214, 1
      %v254 = vrot.slane %v215, 1
      %v255 = vsel %vm234, %v253, %v254
      %v256 = vrot.slane %v216, 1
      %v257 = vrot.slane %v217, 1
      %v258 = vsel %vm234, %v256, %v257
      %v259 = vld [vmem:[%s1] sm:$0xff]
      %v260 = vld [vmem:[%s1 + $0x8] sm:$0xff]
      %v261 = vld [vmem:[%s1 + $0x10] sm:$0xff]
      %v262 = vld [vmem:[%s1 + $0x18] sm:$0xff]
      %s263 = scalar_lea.vmem %s1, 32
      %v264 = vld [vmem:[%s263] sm:$0xff]
      %v265 = vld [vmem:[%s263 + $0x8] sm:$0xff]
      %v266 = vld [vmem:[%s263 + $0x10] sm:$0xff]
      %v267 = vld [vmem:[%s263 + $0x18] sm:$0xff]
      %vm268 = vcmask 261120
      %v269 = vsel %vm268, %v237, 0
      %v271 = vsel %vm268, %v240, 0
      %v273 = vsel %vm268, %v243, 0
      %v275 = vsel %vm268, %v246, 0
      %v277 = vsel %vm268, %v249, 0
      %v279 = vsel %vm268, %v252, 0
      %v281 = vsel %vm268, %v255, 0
      %v283 = vsel %vm268, %v258, 0
      %285 = vmatprep.subr.mxu0 0.0
      %286 = vmatpush1.msra.mxu0 0.0
      %287 = vmatprep.subr.mxu0 0.0
      %288 = vmatpush1.msra.mxu0 0.0
      %289 = vmatprep.subr.mxu0 0.0
      %290 = vmatpush1.msra.mxu0 0.0
      %291 = vmatprep.subr.mxu0 0.0
      %292 = vmatpush1.msra.mxu0 0.0
      %293 = vmatprep.subr.mxu0 0.0
      %294 = vmatpush1.msra.mxu0 0.0
      %295 = vmatprep.subr.mxu0 0.0
      %296 = vmatpush1.msra.mxu0 0.0
      %297 = vmatprep.subr.mxu0 0.0
      %298 = vmatpush1.msra.mxu0 0.0
      %299 = vmatprep.subr.mxu0 0.0
      %300 = vmatpush1.msra.mxu0 0.0
      %301 = vmatprep.subr.mxu0 0.0
      %302 = vmatpush1.msra.mxu0 0.0
      %303 = vmatprep.subr.mxu0 0.0
      %304 = vmatpush1.msra.mxu0 0.0
      %305 = vmatprep.subr.mxu0 0.0
      %306 = vmatpush1.msra.mxu0 0.0
      %307 = vmatprep.subr.mxu0 0.0
      %308 = vmatpush1.msra.mxu0 0.0
      %309 = vmatprep.subr.mxu0 0.0
      %310 = vmatpush1.msra.mxu0 %v267
      %311 = vmatprep.subr.mxu0 0.0
      %312 = vmatpush1.msra.mxu0 %v266
      %313 = vmatprep.subr.mxu0 0.0
      %314 = vmatpush1.msra.mxu0 %v265
      %315 = vmatprep.subr.mxu0 0.0
      %316 = vmatpush1.msra.mxu0 %v264
      %317 = vmatprep.subr.mxu0 0.0
      %318 = vmatpush2.msra.mxu0 0.0
      %319 = vmatprep.subr.mxu0 0.0
      %320 = vmatpush2.msra.mxu0 0.0
      %321 = vmatprep.subr.mxu0 0.0
      %322 = vmatpush2.msra.mxu0 0.0
      %323 = vmatprep.subr.mxu0 0.0
      %324 = vmatpush2.msra.mxu0 0.0
      %325 = vmatprep.subr.mxu0 0.0
      %326 = vmatpush2.msra.mxu0 0.0
      %327 = vmatprep.subr.mxu0 0.0
      %328 = vmatpush2.msra.mxu0 0.0
      %329 = vmatprep.subr.mxu0 0.0
      %330 = vmatpush2.msra.mxu0 0.0
      %331 = vmatprep.subr.mxu0 0.0
      %332 = vmatpush2.msra.mxu0 0.0
      %333 = vmatprep.subr.mxu0 0.0
      %334 = vmatpush2.msra.mxu0 0.0
      %335 = vmatprep.subr.mxu0 0.0
      %336 = vmatpush2.msra.mxu0 0.0
      %337 = vmatprep.subr.mxu0 0.0
      %338 = vmatpush2.msra.mxu0 0.0
      %339 = vmatprep.subr.mxu0 0.0
      %340 = vmatpush2.msra.mxu0 0.0
      %341 = vmatprep.subr.mxu0 0.0
      %342 = vmatpush2.msra.mxu0 0.0
      %343 = vmatprep.subr.mxu0 0.0
      %344 = vmatpush2.msra.mxu0 0.0
      %345 = vmatprep.subr.mxu0 0.0
      %346 = vmatpush2.msra.mxu0 0.0
      %347 = vmatprep.subr.mxu0 0.0
      %348 = vmatpush2.msra.mxu0 0.0
      %349 = vmatprep.mubr.f32.mxu0 0.0
      %350 = vmatmul.mubr.f32.gmra.mxu0 %v269
      %v351 = vpop.f32.mrf.mxu0
      %v352 = vadd.f32 0.0, %v351
      %v353 = vpop.f32.mrf.mxu0
      %354 = vmatprep.mubr.f32.mxu0 0.0
      %355 = vmatmul.mubr.f32.gmra.mxu0 %v271
      %v356 = vpop.f32.mrf.mxu0
      %v357 = vadd.f32 0.0, %v356
      %v358 = vpop.f32.mrf.mxu0
      %359 = vmatprep.mubr.f32.mxu0 0.0
      %360 = vmatmul.mubr.f32.gmra.mxu0 %v273
      %v361 = vpop.f32.mrf.mxu0
      %v362 = vadd.f32 0.0, %v361
      %v363 = vpop.f32.mrf.mxu0
      %364 = vmatprep.mubr.f32.mxu0 0.0
      %365 = vmatmul.mubr.f32.gmra.mxu0 %v275
      %v366 = vpop.f32.mrf.mxu0
      %v367 = vadd.f32 0.0, %v366
      %v368 = vpop.f32.mrf.mxu0
      %369 = vmatprep.mubr.f32.mxu0 0.0
      %370 = vmatmul.mubr.f32.gmra.mxu0 %v277
      %v371 = vpop.f32.mrf.mxu0
      %v372 = vadd.f32 0.0, %v371
      %v373 = vpop.f32.mrf.mxu0
      %374 = vmatprep.mubr.f32.mxu0 0.0
      %375 = vmatmul.mubr.f32.gmra.mxu0 %v279
      %v376 = vpop.f32.mrf.mxu0
      %v377 = vadd.f32 0.0, %v376
      %v378 = vpop.f32.mrf.mxu0
      %379 = vmatprep.mubr.f32.mxu0 0.0
      %380 = vmatmul.mubr.f32.gmra.mxu0 %v281
      %v381 = vpop.f32.mrf.mxu0
      %v382 = vadd.f32 0.0, %v381
      %v383 = vpop.f32.mrf.mxu0
      %384 = vmatprep.mubr.f32.mxu0 0.0
      %385 = vmatmul.mubr.f32.gmra.mxu0 %v283
      %v386 = vpop.f32.mrf.mxu0
      %v387 = vadd.f32 0.0, %v386
      %v388 = vpop.f32.mrf.mxu0
      %389 = vdwg.mxu0
      %v390 = vsel %vm268, %v202, 0
      %v392 = vsel %vm268, %v204, 0
      %v394 = vsel %vm268, %v206, 0
      %v396 = vsel %vm268, %v208, 0
      %v398 = vsel %vm268, %v210, 0
      %v400 = vsel %vm268, %v212, 0
      %v402 = vsel %vm268, %v214, 0
      %v404 = vsel %vm268, %v216, 0
      %406 = vmatprep.subr.mxu0 0.0
      %407 = vmatpush1.msra.mxu0 0.0
      %408 = vmatprep.subr.mxu0 0.0
      %409 = vmatpush1.msra.mxu0 0.0
      %410 = vmatprep.subr.mxu0 0.0
      %411 = vmatpush1.msra.mxu0 0.0
      %412 = vmatprep.subr.mxu0 0.0
      %413 = vmatpush1.msra.mxu0 0.0
      %414 = vmatprep.subr.mxu0 0.0
      %415 = vmatpush1.msra.mxu0 0.0
      %416 = vmatprep.subr.mxu0 0.0
      %417 = vmatpush1.msra.mxu0 0.0
      %418 = vmatprep.subr.mxu0 0.0
      %419 = vmatpush1.msra.mxu0 0.0
      %420 = vmatprep.subr.mxu0 0.0
      %421 = vmatpush1.msra.mxu0 0.0
      %422 = vmatprep.subr.mxu0 0.0
      %423 = vmatpush1.msra.mxu0 0.0
      %424 = vmatprep.subr.mxu0 0.0
      %425 = vmatpush1.msra.mxu0 0.0
      %426 = vmatprep.subr.mxu0 0.0
      %427 = vmatpush1.msra.mxu0 0.0
      %428 = vmatprep.subr.mxu0 0.0
      %429 = vmatpush1.msra.mxu0 0.0
      %430 = vmatprep.subr.mxu0 0.0
      %431 = vmatpush1.msra.mxu0 %v262
      %432 = vmatprep.subr.mxu0 0.0
      %433 = vmatpush1.msra.mxu0 %v261
      %434 = vmatprep.subr.mxu0 0.0
      %435 = vmatpush1.msra.mxu0 %v260
      %436 = vmatprep.subr.mxu0 0.0
      %437 = vmatpush1.msra.mxu0 %v259
      %438 = vmatprep.subr.mxu0 0.0
      %439 = vmatpush2.msra.mxu0 0.0
      %440 = vmatprep.subr.mxu0 0.0
      %441 = vmatpush2.msra.mxu0 0.0
      %442 = vmatprep.subr.mxu0 0.0
      %443 = vmatpush2.msra.mxu0 0.0
      %444 = vmatprep.subr.mxu0 0.0
      %445 = vmatpush2.msra.mxu0 0.0
      %446 = vmatprep.subr.mxu0 0.0
      %447 = vmatpush2.msra.mxu0 0.0
      %448 = vmatprep.subr.mxu0 0.0
      %449 = vmatpush2.msra.mxu0 0.0
      %450 = vmatprep.subr.mxu0 0.0
      %451 = vmatpush2.msra.mxu0 0.0
      %452 = vmatprep.subr.mxu0 0.0
      %453 = vmatpush2.msra.mxu0 0.0
      %454 = vmatprep.subr.mxu0 0.0
      %455 = vmatpush2.msra.mxu0 0.0
      %456 = vmatprep.subr.mxu0 0.0
      %457 = vmatpush2.msra.mxu0 0.0
      %458 = vmatprep.subr.mxu0 0.0
      %459 = vmatpush2.msra.mxu0 0.0
      %460 = vmatprep.subr.mxu0 0.0
      %461 = vmatpush2.msra.mxu0 0.0
      %462 = vmatprep.subr.mxu0 0.0
      %463 = vmatpush2.msra.mxu0 0.0
      %464 = vmatprep.subr.mxu0 0.0
      %465 = vmatpush2.msra.mxu0 0.0
      %466 = vmatprep.subr.mxu0 0.0
      %467 = vmatpush2.msra.mxu0 0.0
      %468 = vmatprep.subr.mxu0 0.0
      %469 = vmatpush2.msra.mxu0 0.0
      %470 = vmatprep.mubr.f32.mxu0 0.0
      %471 = vmatmul.mubr.f32.gmra.mxu0 %v390
      %v472 = vpop.f32.mrf.mxu0
      %v473 = vadd.f32 %v352, %v472
      %v474 = vpop.f32.mrf.mxu0
      %475 = vmatprep.mubr.f32.mxu0 0.0
      %476 = vmatmul.mubr.f32.gmra.mxu0 %v392
      %v477 = vpop.f32.mrf.mxu0
      %v478 = vadd.f32 %v357, %v477
      %v479 = vpop.f32.mrf.mxu0
      %480 = vmatprep.mubr.f32.mxu0 0.0
      %481 = vmatmul.mubr.f32.gmra.mxu0 %v394
      %v482 = vpop.f32.mrf.mxu0
      %v483 = vadd.f32 %v362, %v482
      %v484 = vpop.f32.mrf.mxu0
      %485 = vmatprep.mubr.f32.mxu0 0.0
      %486 = vmatmul.mubr.f32.gmra.mxu0 %v396
      %v487 = vpop.f32.mrf.mxu0
      %v488 = vadd.f32 %v367, %v487
      %v489 = vpop.f32.mrf.mxu0
      %490 = vmatprep.mubr.f32.mxu0 0.0
      %491 = vmatmul.mubr.f32.gmra.mxu0 %v398
      %v492 = vpop.f32.mrf.mxu0
      %v493 = vadd.f32 %v372, %v492
      %v494 = vpop.f32.mrf.mxu0
      %495 = vmatprep.mubr.f32.mxu0 0.0
      %496 = vmatmul.mubr.f32.gmra.mxu0 %v400
      %v497 = vpop.f32.mrf.mxu0
      %v498 = vadd.f32 %v377, %v497
      %v499 = vpop.f32.mrf.mxu0
      %500 = vmatprep.mubr.f32.mxu0 0.0
      %501 = vmatmul.mubr.f32.gmra.mxu0 %v402
      %v502 = vpop.f32.mrf.mxu0
      %v503 = vadd.f32 %v382, %v502
      %v504 = vpop.f32.mrf.mxu0
      %505 = vmatprep.mubr.f32.mxu0 0.0
      %506 = vmatmul.mubr.f32.gmra.mxu0 %v404
      %v507 = vpop.f32.mrf.mxu0
      %v508 = vadd.f32 %v387, %v507
      %v509 = vpop.f32.mrf.mxu0
      %510 = vdwg.mxu0
      %v511 = vld [vmem:[%s2] sm:$0x1]
      %v513 = vlaneseq
      %v514 = vshrl.u32 %v513, 7
      %v515 = vsub.s32 0, %v514
      %v516 = vrot.slane %v511, %v515
      %v518 = vadd.f32 %v473, %v516
      %v519 = vadd.f32 %v478, %v516
      %v520 = vadd.f32 %v483, %v516
      %v521 = vadd.f32 %v488, %v516
      %v522 = vadd.f32 %v493, %v516
      %v523 = vadd.f32 %v498, %v516
      %v524 = vadd.f32 %v503, %v516
      %v525 = vadd.f32 %v508, %v516
      %p526 = scmp.eq.s32.totalorder %s19, 0
      // Predicated region
      $region33: #{tpu_custom_call.1} parent=31 // pred_check
        %p527 = pneg %p526
      $region34: #{tpu_custom_call.1} parent=31 // pred_check_branch
        %529 = sbr.rel (%p527) target = $region36
      $region35: #{tpu_custom_call.1} parent=31 // pred_region
        %vm530 = vcmask 57344
        %531 = vst.msk [vmem:[#allocation2] sm:$0x1] %vm530, 0.0
        %532 = vst.msk [vmem:[#allocation3] sm:$0x1] %vm530, 0.0
      $region36: #{tpu_custom_call.1} parent=31 // pred_fallthru
        _
      %v533 = vld [vmem:[#allocation2] sm:$0x1]
      %vm534 = vcmask 64512
      %v535 = vsel %vm534, %v518, 0.0
      %v536 = vsel %vm534, %v519, 0.0
      %v537 = vadd.f32 %v535, %v536
      %v538 = vsel %vm534, %v520, 0.0
      %v539 = vadd.f32 %v537, %v538
      %v540 = vsel %vm534, %v521, 0.0
      %v541 = vadd.f32 %v539, %v540
      %v542 = vsel %vm534, %v522, 0.0
      %v543 = vadd.f32 %v541, %v542
      %v544 = vsel %vm534, %v523, 0.0
      %v545 = vadd.f32 %v543, %v544
      %v546 = vsel %vm534, %v524, 0.0
      %v547 = vadd.f32 %v545, %v546
      %v548 = vsel %vm534, %v525, 0.0
      %v549 = vadd.f32 %v547, %v548
      %v550 = vrot.slane %v549, 4
      %v551 = vadd.f32 %v549, %v550
      %v552 = vrot.slane %v551, 2
      %v553 = vadd.f32 %v551, %v552
      %v554 = vrot.slane %v553, 1
      %v555 = vadd.f32 %v553, %v554
      %v556 = vadd.f32 %v533, %v555
      %vm557 = vcmask 57344
      %558 = vst.msk [vmem:[#allocation2] sm:$0x1] %vm557, %v556
      %v559 = vld [vmem:[#allocation3] sm:$0x1]
      %v560 = vmul.f32 %v518, %v518
      %v561 = vmul.f32 %v519, %v519
      %v562 = vmul.f32 %v520, %v520
      %v563 = vmul.f32 %v521, %v521
      %v564 = vmul.f32 %v522, %v522
      %v565 = vmul.f32 %v523, %v523
      %v566 = vmul.f32 %v524, %v524
      %v567 = vmul.f32 %v525, %v525
      %v568 = vsel %vm534, %v560, 0.0
      %v569 = vsel %vm534, %v561, 0.0
      %v570 = vadd.f32 %v568, %v569
      %v571 = vsel %vm534, %v562, 0.0
      %v572 = vadd.f32 %v570, %v571
      %v573 = vsel %vm534, %v563, 0.0
      %v574 = vadd.f32 %v572, %v573
      %v575 = vsel %vm534, %v564, 0.0
      %v576 = vadd.f32 %v574, %v575
      %v577 = vsel %vm534, %v565, 0.0
      %v578 = vadd.f32 %v576, %v577
      %v579 = vsel %vm534, %v566, 0.0
      %v580 = vadd.f32 %v578, %v579
      %v581 = vsel %vm534, %v567, 0.0
      %v582 = vadd.f32 %v580, %v581
      %v583 = vrot.slane %v582, 4
      %v584 = vadd.f32 %v582, %v583
      %v585 = vrot.slane %v584, 2
      %v586 = vadd.f32 %v584, %v585
      %v587 = vrot.slane %v586, 1
      %v588 = vadd.f32 %v586, %v587
      %v589 = vadd.f32 %v559, %v588
      %590 = vst.msk [vmem:[#allocation3] sm:$0x1] %vm557, %v589
      %s591 = smul.u32 %s19, 64
      %s592 = scalar_lea.vmem %s201, %s591
      %593 = vst.msk [vmem:[%s592] sm:$0xff] %vm534, %v518
      %594 = vst.msk [vmem:[%s592 + $0x8] sm:$0xff] %vm534, %v519
      %595 = vst.msk [vmem:[%s592 + $0x10] sm:$0xff] %vm534, %v520
      %596 = vst.msk [vmem:[%s592 + $0x18] sm:$0xff] %vm534, %v521
      %597 = vst.msk [vmem:[%s592 + $0x20] sm:$0xff] %vm534, %v522
      %598 = vst.msk [vmem:[%s592 + $0x28] sm:$0xff] %vm534, %v523
      %599 = vst.msk [vmem:[%s592 + $0x30] sm:$0xff] %vm534, %v524
      %600 = vst.msk [vmem:[%s592 + $0x38] sm:$0xff] %vm534, %v525
      // Predicated region
      $region37: #{tpu_custom_call.1} parent=31 // pred_check
        %p601 = pneg %p526
      $region38: #{tpu_custom_call.1} parent=31 // pred_check_branch
        %603 = sbr.rel (%p601) target = $region40
      $region39: #{tpu_custom_call.1} parent=31 // pred_region
        %v604 = vld [vmem:[#allocation2] sm:$0x1]
        %v605 = vmul.f32 %v604, 0.015625
        %v606 = vld [vmem:[#allocation3] sm:$0x1]
        %v607 = vmul.f32 %v606, 0.015625
        %v608 = vmul.f32 %v605, %v605
        %v609 = vsub.f32 %v607, %v608
        %v610 = vmax.f32 %v609, 0.0
        %v611 = vadd.f32 %v610, 1e-05
        %v612 = vrsqrt.pop %v611
        %v613 = vsub.f32 0.0, %v605
        %v614 = vmul.f32 %v613, %v612
        %v615 = vld [vmem:[%s201] sm:$0xff]
        %v616 = vld [vmem:[%s201 + $0x8] sm:$0xff]
        %v617 = vld [vmem:[%s201 + $0x10] sm:$0xff]
        %v618 = vld [vmem:[%s201 + $0x18] sm:$0xff]
        %v619 = vld [vmem:[%s201 + $0x20] sm:$0xff]
        %v620 = vld [vmem:[%s201 + $0x28] sm:$0xff]
        %v621 = vld [vmem:[%s201 + $0x30] sm:$0xff]
        %v622 = vld [vmem:[%s201 + $0x38] sm:$0xff]
        %v624 = vlaneseq
        %v625 = vshrl.u32 %v624, 7
        %v626 = vsub.s32 0, %v625
        %v627 = vrot.slane %v612, %v626
        %v629 = vmul.f32 %v615, %v627
        %v630 = vmul.f32 %v616, %v627
        %v631 = vmul.f32 %v617, %v627
        %v632 = vmul.f32 %v618, %v627
        %v633 = vmul.f32 %v619, %v627
        %v634 = vmul.f32 %v620, %v627
        %v635 = vmul.f32 %v621, %v627
        %v636 = vmul.f32 %v622, %v627
        %v638 = vlaneseq
        %v639 = vshrl.u32 %v638, 7
        %v640 = vsub.s32 0, %v639
        %v641 = vrot.slane %v614, %v640
        %v643 = vadd.f32 %v629, %v641
        %v644 = vadd.f32 %v630, %v641
        %v645 = vadd.f32 %v631, %v641
        %v646 = vadd.f32 %v632, %v641
        %v647 = vadd.f32 %v633, %v641
        %v648 = vadd.f32 %v634, %v641
        %v649 = vadd.f32 %v635, %v641
        %v650 = vadd.f32 %v636, %v641
        %vm651 = vcmp.ge.f32.partialorder %v643, 0.0
        %vm652 = vcmp.ge.f32.partialorder %v644, 0.0
        %vm653 = vcmp.ge.f32.partialorder %v645, 0.0
        %vm654 = vcmp.ge.f32.partialorder %v646, 0.0
        %vm655 = vcmp.ge.f32.partialorder %v647, 0.0
        %vm656 = vcmp.ge.f32.partialorder %v648, 0.0
        %vm657 = vcmp.ge.f32.partialorder %v649, 0.0
        %vm658 = vcmp.ge.f32.partialorder %v650, 0.0
        %v659 = vmul.f32 %v643, 0.2
        %v660 = vmul.f32 %v644, 0.2
        %v661 = vmul.f32 %v645, 0.2
        %v662 = vmul.f32 %v646, 0.2
        %v663 = vmul.f32 %v647, 0.2
        %v664 = vmul.f32 %v648, 0.2
        %v665 = vmul.f32 %v649, 0.2
        %v666 = vmul.f32 %v650, 0.2
        %v667 = vsel %vm651, %v643, %v659
        %v668 = vsel %vm652, %v644, %v660
        %v669 = vsel %vm653, %v645, %v661
        %v670 = vsel %vm654, %v646, %v662
        %v671 = vsel %vm655, %v647, %v663
        %v672 = vsel %vm656, %v648, %v664
        %v673 = vsel %vm657, %v649, %v665
        %v674 = vsel %vm658, %v650, %v666
        %675 = vst.msk [vmem:[%s201] sm:$0xff] %vm534, %v667
        %676 = vst.msk [vmem:[%s201 + $0x8] sm:$0xff] %vm534, %v668
        %677 = vst.msk [vmem:[%s201 + $0x10] sm:$0xff] %vm534, %v669
        %678 = vst.msk [vmem:[%s201 + $0x18] sm:$0xff] %vm534, %v670
        %679 = vst.msk [vmem:[%s201 + $0x20] sm:$0xff] %vm534, %v671
        %680 = vst.msk [vmem:[%s201 + $0x28] sm:$0xff] %vm534, %v672
        %681 = vst.msk [vmem:[%s201 + $0x30] sm:$0xff] %vm534, %v673
        %682 = vst.msk [vmem:[%s201 + $0x38] sm:$0xff] %vm534, %v674
      $region40: #{tpu_custom_call.1} parent=31 // pred_fallthru
        _
      %p683 = scmp.lt.s32.totalorder %s18, 1
      %s684 = scalar_select %p683, %s18, 1
      %s685 = smul.addr %s684, 8
      %s686 = smul.addr %s685, 8
      %s687 = scalar_lea.vmem %s3, %s686
      // Predicated region
      $region41: #{tpu_custom_call.1} parent=31 // pred_check
        %p688 = pneg %p114
      $region42: #{tpu_custom_call.1} parent=31 // pred_check_branch
        %690 = sbr.rel (%p688) target = $region44
      $region43: #{tpu_custom_call.1} parent=31 // pred_region
        _
      $region44: #{tpu_custom_call.1} parent=31 // pred_fallthru
        _
    $region32: #{tpu_custom_call.1} parent=5 // pred_fallthru
      _
    %p691 = scmp.le.s32.totalorder 2, %s9
    // Predicated region
    $region45: #{tpu_custom_call.1} parent=5 // pred_check
      %p692 = pneg %p691
    $region46: #{tpu_custom_call.1} parent=5 // pred_check_branch
      %694 = sbr.rel (%p692) target = $region48
    $region47: #{tpu_custom_call.1} parent=5 // pred_region
      %s695 = ssub.s32 %s9, 2
      // Predicated region
      $region49: #{tpu_custom_call.1} parent=47 // pred_check
        %p696 = pneg %p120
      $region50: #{tpu_custom_call.1} parent=47 // pred_check_branch
        %698 = sbr.rel (%p696) target = $region52
      $region51: #{tpu_custom_call.1} parent=47 // pred_region
        %p699 = scmp.lt.s32.totalorder %s20, 1
        %s700 = scalar_select %p699, %s20, 1
        %s701 = smul.addr %s700, 8
        %s702 = smul.addr %s701, 8
        %s703 = scalar_lea.vmem %s3, %s702
      $region52: #{tpu_custom_call.1} parent=47 // pred_fallthru
        _
    $region48: #{tpu_custom_call.1} parent=5 // pred_fallthru
      _
  $region6: #{tpu_custom_call.1} parent=0 // loop_footer
    %s13 = sadd.s32 1, %s9
  $region7: #{tpu_custom_call.1} parent=0 // loop_footer_branch
    %8 = sbr.rel target = $region3
  $region8: #{tpu_custom_call.1} parent=0 // loop_exit
    _

</llo_original>
